<compile_context>
chip_gen: v7x
topology: tpu7x:2x2x1
jax: 0.10.0
libtpu: 0.0.40
codegen_flags: <defaults>
</compile_context>

<pallas_src>
import functools
import math

import jax
import jax.numpy as jnp
from jax.experimental import pallas as pl
from jax.experimental.pallas import tpu as pltpu


# ---------------------------------------------------------------------------
# chip / tiling helpers
# ---------------------------------------------------------------------------
@functools.lru_cache(maxsize=1)
def _chip_tuning():
    kind = ""
    try:
        kind = jax.devices()[0].device_kind.lower()
    except Exception:
        pass
    vmem = None
    try:
        vmem = int(getattr(pltpu.get_tpu_info(), "vmem_capacity_bytes", 0)) or None
    except Exception:
        vmem = None
    if vmem is None:
        big = any(tag in kind for tag in ("v4", "v5", "v6"))
        vmem = (128 if big else 64) * 1024 * 1024        # conservative: v7x = 64 MiB
    is_v5e = ("v5e" in kind) or ("v5 lite" in kind) or ("v5lite" in kind)
    vmem_limit = min(int(vmem * 3 // 4), 100 * 1024 * 1024)
    return {
        # v5e: 4x128x128 MXU + single vst slot -> 128-wide N tiles, smaller K
        "tm": 256 if is_v5e else 512,
        "tn": 128 if is_v5e else 256,
        "tk": 256 if is_v5e else 512,
        "vmem_limit": vmem_limit,
        "attn_budget": vmem_limit // 2,   # headroom for double-buffered K/V tiles
        "tq": 256,
        "ts": 512,
    }


def _pick_tile(dim, target, align):
    """Largest tile <= target that divides `dim` and is a multiple of `align`;
    falls back to the full dimension (always legal w.r.t. the (8,128) rule)."""
    if dim <= target:
        return dim
    t = (target // align) * align
    while t >= align:
        if dim % t == 0:
            return t
        t -= align
    return dim


def _choose_tile(dim, target, align):
    """(tile, padded_dim) for the linear kernel: prefer an aligned divisor,
    otherwise pad the dimension instead of taking a whole-dim tile."""
    if dim <= target:
        return dim, dim
    t = max((target // align) * align, align)
    cand = t
    while cand >= align:
        if dim % cand == 0:
            return cand, dim
        cand -= align
    padded = ((dim + t - 1) // t) * t
    return t, padded


# ---------------------------------------------------------------------------
# Kernel 1: tiled linear projection   y = x @ W^T + b
#   x: (M, K), W passed pre-transposed as wt = (K, N), b as (1, N)
# ---------------------------------------------------------------------------
def _linear_kernel(x_ref, wt_ref, b_ref, o_ref, acc_ref):
    @pl.when(pl.program_id(2) == 0)
    def _init():
        acc_ref[...] = jnp.zeros(acc_ref.shape, jnp.float32)

    acc_ref[...] += jnp.dot(x_ref[...], wt_ref[...],
                            preferred_element_type=jnp.float32)

    @pl.when(pl.program_id(2) == pl.num_programs(2) - 1)
    def _finish():
        o_ref[...] = (acc_ref[...] + b_ref[...].astype(jnp.float32)
                      ).astype(o_ref.dtype)


def linear(x, wt, b2d):
    """x: (M, K); wt: (K, N) (already transposed once); b2d: (1, N)."""
    M, K = x.shape
    N = wt.shape[1]
    tune = _chip_tuning()
    tm, Mp = _choose_tile(M, tune["tm"], 8)
    tn, Np = _choose_tile(N, tune["tn"], 128)
    tk, Kp = _choose_tile(K, tune["tk"], 128)
    if (Mp, Kp) != (M, K):
        x = jnp.pad(x, ((0, Mp - M), (0, Kp - K)))
    if (Kp, Np) != (K, N):
        wt = jnp.pad(wt, ((0, Kp - K), (0, Np - N)))
        b2d = jnp.pad(b2d, ((0, 0), (0, Np - N)))
    grid = (Mp // tm, Np // tn, Kp // tk)
    itemsize = jnp.dtype(x.dtype).itemsize

    out = pl.pallas_call(
        _linear_kernel,
        out_shape=jax.ShapeDtypeStruct((Mp, Np), x.dtype),
        grid=grid,
        in_specs=[
            pl.BlockSpec((tm, tk), lambda i, j, k: (i, k)),
            pl.BlockSpec((tk, tn), lambda i, j, k: (k, j)),
            pl.BlockSpec((1, tn), lambda i, j, k: (0, j)),
        ],
        out_specs=pl.BlockSpec((tm, tn), lambda i, j, k: (i, j)),
        scratch_shapes=[pltpu.VMEM((tm, tn), jnp.float32)],
        compiler_params=pltpu.CompilerParams(
            dimension_semantics=("parallel", "parallel", "arbitrary"),
            vmem_limit_bytes=tune["vmem_limit"]),
        cost_estimate=pl.CostEstimate(
            flops=2 * Mp * Np * Kp,
            transcendentals=0,
            bytes_accessed=(Mp * Kp + Kp * Np + Mp * Np + Np) * itemsize),
    )(x, wt, b2d)
    if (Mp, Np) != (M, N):
        out = out[:M, :N]
    return out


# ---------------------------------------------------------------------------
# Kernel 2: flash-style attention core.
#   q_arr: (T, B, Wq), k_arr/v_arr: (S, B, Wk/Wv)  (E-minor, no relayout);
#   heads are sliced out of the lane axis in blocks of hb*D columns.
#   mask (optional): (B, 1, S) additive f32 (0 / -1e9).
#   out: (T, B, E) -> merge-heads in the wrapper is a free reshape.
# grid = (B/bb, H/hb, T/tq, S/ts); online softmax over the (last) S axis.
# ---------------------------------------------------------------------------
def _flash_attn_kernel(*refs, hb, head_dim, scale, has_mask):
    if has_mask:
        q_ref, k_ref, v_ref, m_ref, o_ref, m_sc, l_sc, acc_sc = refs
    else:
        q_ref, k_ref, v_ref, o_ref, m_sc, l_sc, acc_sc = refs
        m_ref = None

    s_idx = pl.program_id(3)
    D = head_dim

    @pl.when(s_idx == 0)
    def _init():
        m_sc[...] = jnp.full(m_sc.shape, -jnp.inf, jnp.float32)
        l_sc[...] = jnp.zeros(l_sc.shape, jnp.float32)
        acc_sc[...] = jnp.zeros(acc_sc.shape, jnp.float32)

    # (tq, bb, hb*D) -> (bb, tq, hb*D): batch-leading for the MXU einsums.
    # In-VMEM relayout (XLU has slack here) instead of an HBM transpose.
    qb = jnp.transpose(q_ref[...] * scale, (1, 0, 2))
    kb = jnp.transpose(k_ref[...], (1, 0, 2))
    vb = jnp.transpose(v_ref[...], (1, 0, 2))
    mask = m_ref[...] if has_mask else None          # (bb, 1, ts)

    for i in range(hb):                              # static unroll over head block
        sl = slice(i * D, (i + 1) * D)
        s = jnp.einsum("btd,bsd->bts", qb[:, :, sl], kb[:, :, sl],
                       preferred_element_type=jnp.float32)      # (bb, tq, ts)
        if has_mask:
            s = s + mask
        m_prev = m_sc[i]
        m_new = jnp.maximum(m_prev, jnp.max(s, axis=-1, keepdims=True))
        alpha = jnp.exp(m_prev - m_new)
        p = jnp.exp(s - m_new)
        l_sc[i] = alpha * l_sc[i] + jnp.sum(p, axis=-1, keepdims=True)
        acc_sc[i] = alpha * acc_sc[i] + jnp.einsum(
            "bts,bsd->btd", p.astype(vb.dtype), vb[:, :, sl],
            preferred_element_type=jnp.float32)
        m_sc[i] = m_new

    # TODO(synk): attention-probability dropout (dropout_prob > 0) is not applied.

    @pl.when(s_idx == pl.num_programs(3) - 1)
    def _finish():
        outs = []
        for i in range(hb):
            inv_l = pl.reciprocal(l_sc[i], approx=False)    # exact; once per tile
            outs.append(acc_sc[i] * inv_l)                  # (bb, tq, D) f32
        o = jnp.concatenate(outs, axis=-1)                  # (bb, tq, hb*D)
        # lane-dense store: block last dim = hb*D (>=128 or full E)
        o_ref[...] = jnp.transpose(o, (1, 0, 2)).astype(o_ref.dtype)


def _attn_vmem_estimate(hb, bb, tq, ts, D, itemsize):
    bd = hb * D
    dpad = max(D, 128)
    io = 2 * itemsize * bb * bd * (2 * tq + 2 * ts)       # q,out / k,v double-buffered
    scr = 4 * hb * bb * tq * (2 * 128 + dpad)             # m,l (lane-padded to 128) + acc
    tmp = 4 * bb * tq * ts * 2                            # f32 scores + probs
    tmp += 4 * bb * (tq + 2 * ts) * bd                    # batch-major copies of q/k/v
    return int(1.15 * (io + scr + tmp))


def _pick_head_block(H, D, bb, tq, ts, itemsize, last_dims, budget, other_parallel):
    def legal(hb):
        bd = hb * D
        return all(bd % 128 == 0 or bd == w for w in last_dims)

    divisors = [h for h in range(H, 0, -1) if H % h == 0 and legal(h)]
    if not divisors:
        raise ValueError("num_heads / head_dim shape has no TPU-legal head block")
    fitting = [h for h in divisors
               if _attn_vmem_estimate(h, bb, tq, ts, D, itemsize) <= budget]
    fitting = fitting or divisors[-1:]
    hb = fitting[0]
    # keep >= 2 independent parallel work units for multi-TensorCore chips (v7x)
    if other_parallel * (H // hb) < 2:
        for cand in fitting:
            if other_parallel * (H // cand) >= 2:
                hb = cand
                break
    return hb


def attention_core(q_arr, k_arr, v_arr, col_offsets, num_heads, head_dim, mask_add):
    T, B, Wq = q_arr.shape
    S = k_arr.shape[0]
    H, D = num_heads, head_dim
    E = H * D
    dtype = q_arr.dtype
    isz = jnp.dtype(dtype).itemsize
    tune = _chip_tuning()

    ts = _pick_tile(S, tune["ts"], 128)
    tq = _pick_tile(T, tune["tq"], 8)
    # batch block: 8 keeps every BlockSpec (8,128)-legal; full B when small/odd
    bb = B if (B <= 8 or B % 8) else 8
    last_dims = (Wq, k_arr.shape[2], v_arr.shape[2], E)
    hb = _pick_head_block(H, D, bb, tq, ts, isz, last_dims,
                          tune["attn_budget"], (B // bb) * (T // tq))
    bd = hb * D
    qo, ko, vo = (off // bd for off in col_offsets)

    grid = (B // bb, H // hb, T // tq, S // ts)
    # TODO(synk): on v5e, pipeline_mode=pl.Buffered(3) on the K/V specs can hide
    # the exposed K/V DMA latency of the flash inner loop.
    in_specs = [
        pl.BlockSpec((tq, bb, bd), lambda b, h, q, s: (q, b, h + qo)),
        pl.BlockSpec((ts, bb, bd), lambda b, h, q, s: (s, b, h + ko)),
        pl.BlockSpec((ts, bb, bd), lambda b, h, q, s: (s, b, h + vo)),
    ]
    operands = [q_arr, k_arr, v_arr]
    has_mask = mask_add is not None
    if has_mask:
        in_specs.append(pl.BlockSpec((bb, 1, ts), lambda b, h, q, s: (b, 0, s)))
        operands.append(mask_add)

    kernel = functools.partial(_flash_attn_kernel, hb=hb, head_dim=D,
                               scale=float(D) ** -0.5, has_mask=has_mask)
    return pl.pallas_call(
        kernel,
        out_shape=jax.ShapeDtypeStruct((T, B, E), dtype),
        grid=grid,
        in_specs=in_specs,
        out_specs=pl.BlockSpec((tq, bb, bd), lambda b, h, q, s: (q, b, h)),
        scratch_shapes=[
            pltpu.VMEM((hb, bb, tq, 1), jnp.float32),   # running max
            pltpu.VMEM((hb, bb, tq, 1), jnp.float32),   # running denom
            pltpu.VMEM((hb, bb, tq, D), jnp.float32),   # running weighted sum
        ],
        compiler_params=pltpu.CompilerParams(
            dimension_semantics=("parallel", "parallel", "parallel", "arbitrary"),
            vmem_limit_bytes=tune["vmem_limit"]),
        cost_estimate=pl.CostEstimate(
            flops=4 * B * H * T * S * D,
            transcendentals=B * H * T * S,
            bytes_accessed=(2 * T * B * E + 2 * S * B * E) * isz + B * S * 4),
    )(*operands)


# ---------------------------------------------------------------------------
# Parameter preparation (one-time) and full forward (multi_attn semantics)
# ---------------------------------------------------------------------------
def prepare_params(params):
    """One-time relayout: weights stored pre-transposed (K, N), biases (1, N),
    plus a fused (K, 3E) QKV weight for the self-attention path."""
    p = {
        "q_wt": jnp.transpose(params["q_w"]), "q_b": params["q_b"].reshape(1, -1),
        "k_wt": jnp.transpose(params["k_w"]), "k_b": params["k_b"].reshape(1, -1),
        "v_wt": jnp.transpose(params["v_w"]), "v_b": params["v_b"].reshape(1, -1),
        "out_wt": jnp.transpose(params["out_w"]),
        "out_b": params["out_b"].reshape(1, -1),
    }
    if p["q_wt"].shape == p["k_wt"].shape == p["v_wt"].shape:
        p["qkv_wt"] = jnp.concatenate([p["q_wt"], p["k_wt"], p["v_wt"]], axis=1)
        p["qkv_b"] = jnp.concatenate([p["q_b"], p["k_b"], p["v_b"]], axis=1)
    return p


def _fused_qkv_ok(H, D):
    return any(H % hb == 0 and (hb * D) % 128 == 0 for hb in range(1, H + 1))


def multihead_attention_forward(params, query_2d, key_2d, value_2d, bsz, tgt_len,
                                num_heads, key_padding_mask=None,
                                compute_dtype=None):
    """Pallas equivalent of MultiheadAttention.multi_attn (dropout_prob=0)."""
    E = params["q_wt"].shape[1]
    D = E // num_heads
    src_len = key_2d.shape[0] // bsz
    self_attn = (query_2d is key_2d) and (query_2d is value_2d) and ("qkv_wt" in params)

    if compute_dtype is not None:      # bf16 halves HBM/VMEM traffic (f32 accum kept)
        params = {k: v.astype(compute_dtype) for k, v in params.items()}
        query_2d = query_2d.astype(compute_dtype)
        key_2d = query_2d if self_attn else key_2d.astype(compute_dtype)
        value_2d = query_2d if self_attn else value_2d.astype(compute_dtype)

    if self_attn and _fused_qkv_ok(num_heads, D):
        # one pass over x for all three projections; attention indexes the
        # q/k/v column offsets of the fused output directly (no slicing copy)
        qkv = linear(query_2d, params["qkv_wt"], params["qkv_b"])
        qkv3 = qkv.reshape(tgt_len, bsz, 3 * E)
        q3, k3, v3 = qkv3, qkv3, qkv3
        offsets = (0, E, 2 * E)
    else:
        q3 = linear(query_2d, params["q_wt"], params["q_b"]).reshape(tgt_len, bsz, E)
        k3 = linear(key_2d, params["k_wt"], params["k_b"]).reshape(src_len, bsz, E)
        v3 = linear(value_2d, params["v_wt"], params["v_b"]).reshape(src_len, bsz, E)
        offsets = (0, 0, 0)

    if key_padding_mask is None:
        mask_add = None
    else:
        # fairseq semantics: (bsz, src_len), 1 = padded key.  -1e9 behaves like
        # -inf after exp() in f32; fully padded rows give a uniform distribution.
        mask_add = jnp.where(key_padding_mask.astype(bool), -1e9, 0.0)
        mask_add = mask_add.astype(jnp.float32).reshape(bsz, 1, src_len)

    attn = attention_core(q3, k3, v3, offsets, num_heads, D, mask_add)  # (T, B, E)
    attn_2d = attn.reshape(tgt_len * bsz, E)     # merge heads + flatten: free reshape
    return linear(attn_2d, params["out_wt"], params["out_b"])


# ---------------------------------------------------------------------------
# Deterministic parameter init (mirrors MultiheadAttention.reset_parameters)
# ---------------------------------------------------------------------------
def init_params(key, embed_dim, kdim, vdim):
    ks = jax.random.split(key, 7)

    def xavier_uniform(k, shape, gain):
        fan_out, fan_in = shape
        limit = gain * math.sqrt(6.0 / (fan_in + fan_out))
        return jax.random.uniform(k, shape, jnp.float32, -limit, limit)

    def linear_bias(k, fan_in, n):
        bound = 1.0 / math.sqrt(fan_in)
        return jax.random.uniform(k, (n,), jnp.float32, -bound, bound)

    g = 1.0 / math.sqrt(2.0)   # qkv_same_dim branch
    return {
        "q_w": xavier_uniform(ks[0], (embed_dim, embed_dim), g),
        "k_w": xavier_uniform(ks[1], (embed_dim, kdim), g),
        "v_w": xavier_uniform(ks[2], (embed_dim, vdim), g),
        "out_w": xavier_uniform(ks[3], (embed_dim, embed_dim), 1.0),
        "q_b": linear_bias(ks[4], embed_dim, embed_dim),
        "k_b": linear_bias(ks[5], kdim, embed_dim),
        "v_b": linear_bias(ks[6], vdim, embed_dim),
        "out_b": jnp.zeros((embed_dim,), jnp.float32),
    }


# ---------------------------------------------------------------------------
# Pure-JAX reference for verification
# ---------------------------------------------------------------------------
def reference_mha(params, q2d, k2d, v2d, bsz, tgt_len, num_heads, kpm):
    E = params["q_w"].shape[0]
    hd = E // num_heads
    src_len = k2d.shape[0] // bsz
    q = (q2d @ params["q_w"].T + params["q_b"]) * (hd ** -0.5)
    k = k2d @ params["k_w"].T + params["k_b"]
    v = v2d @ params["v_w"].T + params["v_b"]

    def sh(x, L):
        return jnp.transpose(x.reshape(L, bsz, num_heads, hd), (1, 2, 0, 3))

    qh, kh, vh = sh(q, tgt_len), sh(k, src_len), sh(v, src_len)
    s = jnp.einsum("bhtd,bhsd->bhts", qh, kh)
    if kpm is not None:
        s = s + jnp.where(kpm.astype(bool), -1e9, 0.0)[:, None, None, :]
    p = jax.nn.softmax(s, axis=-1)
    o = jnp.einsum("bhts,bhsd->bhtd", p, vh)
    o = jnp.transpose(o, (2, 0, 1, 3)).reshape(tgt_len * bsz, E)
    return o @ params["out_w"].T + params["out_b"]


if __name__ == "__main__":
    root = jax.random.PRNGKey(0)

    # ---- Case 1: encoder-decoder attention with key padding mask ----------
    embed_dim, num_heads = 32, 4
    bsz, tgt_len, src_len = 2, 8, 8
    kq, kk, kv, kp = jax.random.split(root, 4)
    params = init_params(kp, embed_dim, embed_dim, embed_dim)
    prepared = prepare_params(params)

    query = jax.random.normal(kq, (tgt_len, bsz, embed_dim), jnp.float32)
    key_t = jax.random.normal(kk, (src_len, bsz, embed_dim), jnp.float32)
    value = jax.random.normal(kv, (src_len, bsz, embed_dim), jnp.float32)
    key_padding_mask = jnp.zeros((bsz, src_len), jnp.float32).at[1, -2:].set(1.0)

    q2d = query.reshape(tgt_len * bsz, embed_dim)
    k2d = key_t.reshape(src_len * bsz, embed_dim)
    v2d = value.reshape(src_len * bsz, embed_dim)

    out = multihead_attention_forward(prepared, q2d, k2d, v2d, bsz, tgt_len,
                                      num_heads, key_padding_mask)
    out = jax.block_until_ready(out)
    ref = reference_mha(params, q2d, k2d, v2d, bsz, tgt_len, num_heads,
                        key_padding_mask)
    assert out.shape == (tgt_len * bsz, embed_dim)
    err = float(jnp.max(jnp.abs(out - ref)))
    assert err < 2e-3, f"case1 err={err}"

    # ---- Case 2: self-attention (fused QKV + 128-wide lane-dense blocks) ---
    embed_dim2, num_heads2 = 128, 2
    k2x, k2p = jax.random.split(jax.random.fold_in(root, 1), 2)
    params2 = init_params(k2p, embed_dim2, embed_dim2, embed_dim2)
    prepared2 = prepare_params(params2)
    x = jax.random.normal(k2x, (tgt_len, bsz, embed_dim2), jnp.float32)
    x2d = x.reshape(tgt_len * bsz, embed_dim2)

    out2 = multihead_attention_forward(prepared2, x2d, x2d, x2d, bsz, tgt_len,
                                       num_heads2, None)
    out2 = jax.block_until_ready(out2)
    ref2 = reference_mha(params2, x2d, x2d, x2d, bsz, tgt_len, num_heads2, None)
    assert out2.shape == (tgt_len * bsz, embed_dim2)
    err2 = float(jnp.max(jnp.abs(out2 - ref2)))
    assert err2 < 2e-3, f"case2 err={err2}"

    # ---- Case 3: bf16 compute path (f32 accumulation in-kernel) ------------
    out3 = multihead_attention_forward(prepared, q2d, k2d, v2d, bsz, tgt_len,
                                       num_heads, key_padding_mask,
                                       compute_dtype=jnp.bfloat16)
    out3 = jax.block_until_ready(out3)
    err3 = float(jnp.max(jnp.abs(out3.astype(jnp.float32) - ref)))
    assert out3.shape == (tgt_len * bsz, embed_dim)
    assert err3 < 1.5e-1, f"case3 err={err3}"

    print("KERNEL_OK")
</pallas_src>

<mosaic_0001>
module attributes {stable_mosaic.version = 11 : i64} {
  func.func @_linear_kernel(%arg0: i32, %arg1: i32, %arg2: i32, %arg3: memref<16x32xf32, #tpu.memory_space<vmem>>, %arg4: memref<32x32xf32, #tpu.memory_space<vmem>>, %arg5: memref<1x32xf32, #tpu.memory_space<vmem>>, %arg6: memref<16x32xf32, #tpu.memory_space<vmem>>, %arg7: memref<16x32xf32, #tpu.memory_space<vmem>>) attributes {dimension_semantics = [#tpu.dimension_semantics<parallel>, #tpu.dimension_semantics<parallel>, #tpu.dimension_semantics<arbitrary>], iteration_bounds = array<i64: 1, 1, 1>, scalar_prefetch = 0 : i64, scratch_operands = 1 : i64, tpu.core_type = #tpu.core_type<tc>, window_params = [{transform_indices = @transform_0, window_bounds = array<i64: 16, 32>}, {transform_indices = @transform_1, window_bounds = array<i64: 32, 32>}, {transform_indices = @transform_2, window_bounds = array<i64: 1, 32>}, {transform_indices = @transform_3, window_bounds = array<i64: 16, 32>}]} {
    %c0_i32 = arith.constant 0 : i32
    %0 = arith.cmpi eq, %arg2, %c0_i32 : i32
    %1 = arith.extui %0 : i1 to i32
    %c0_i32_0 = arith.constant 0 : i32
    %2 = arith.cmpi ne, %1, %c0_i32_0 : i32
    scf.if %2 {
      %cst_10 = arith.constant 0.000000e+00 : f32
      %12 = vector.broadcast %cst_10 : f32 to vector<16x32xf32>
      %c0_11 = arith.constant 0 : index
      %c0_12 = arith.constant 0 : index
      %13 = vector.load %arg7[%c0_11, %c0_12] : memref<16x32xf32, #tpu.memory_space<vmem>>, vector<16x32xf32>
      tpu.vector_store %arg7[%c0_11, %c0_12], %12 {strides = array<i32>} : memref<16x32xf32, #tpu.memory_space<vmem>>, vector<16x32xf32>,
    } else {
    }
    %c0 = arith.constant 0 : index
    %c0_1 = arith.constant 0 : index
    %3 = vector.load %arg7[%c0, %c0_1] : memref<16x32xf32, #tpu.memory_space<vmem>>, vector<16x32xf32>
    %c0_2 = arith.constant 0 : index
    %c0_3 = arith.constant 0 : index
    %4 = vector.load %arg3[%c0_2, %c0_3] : memref<16x32xf32, #tpu.memory_space<vmem>>, vector<16x32xf32>
    %c0_4 = arith.constant 0 : index
    %c0_5 = arith.constant 0 : index
    %5 = vector.load %arg4[%c0_4, %c0_5] : memref<32x32xf32, #tpu.memory_space<vmem>>, vector<32x32xf32>
    %cst = arith.constant dense<0.000000e+00> : vector<16x32xf32>
    %6 = tpu.matmul %4, %5, %cst {dimension_numbers = #tpu.dot_dimension_numbers<[1], [0], [0], [1], [0, 0, 1, 1], [], []>} : vector<16x32xf32>, vector<32x32xf32>, vector<16x32xf32> -> vector<16x32xf32>
    %7 = arith.addf %3, %6 : vector<16x32xf32>
    %c0_6 = arith.constant 0 : index
    %c0_7 = arith.constant 0 : index
    %8 = vector.load %arg7[%c0_6, %c0_7] : memref<16x32xf32, #tpu.memory_space<vmem>>, vector<16x32xf32>
    tpu.vector_store %arg7[%c0_6, %c0_7], %7 {strides = array<i32>} : memref<16x32xf32, #tpu.memory_space<vmem>>, vector<16x32xf32>,
    %c0_i32_8 = arith.constant 0 : i32
    %9 = arith.cmpi eq, %arg2, %c0_i32_8 : i32
    %10 = arith.extui %9 : i1 to i32
    %c0_i32_9 = arith.constant 0 : i32
    %11 = arith.cmpi ne, %10, %c0_i32_9 : i32
    scf.if %11 {
      %c0_10 = arith.constant 0 : index
      %c0_11 = arith.constant 0 : index
      %12 = vector.load %arg7[%c0_10, %c0_11] : memref<16x32xf32, #tpu.memory_space<vmem>>, vector<16x32xf32>
      %c0_12 = arith.constant 0 : index
      %c0_13 = arith.constant 0 : index
      %13 = vector.load %arg5[%c0_12, %c0_13] : memref<1x32xf32, #tpu.memory_space<vmem>>, vector<1x32xf32>
      %14 = vector.broadcast %13 : vector<1x32xf32> to vector<16x32xf32>
      %15 = arith.addf %12, %14 : vector<16x32xf32>
      %c0_14 = arith.constant 0 : index
      %c0_15 = arith.constant 0 : index
      %16 = vector.load %arg6[%c0_14, %c0_15] : memref<16x32xf32, #tpu.memory_space<vmem>>, vector<16x32xf32>
      tpu.vector_store %arg6[%c0_14, %c0_15], %15 {strides = array<i32>} : memref<16x32xf32, #tpu.memory_space<vmem>>, vector<16x32xf32>,
    } else {
    }
    return
  }
  func.func @transform_0(%arg0: i32, %arg1: i32, %arg2: i32) -> (i32, i32) {
    %c0_i32 = arith.constant 0 : i32
    return %arg0, %arg2 : i32, i32
  }
  func.func @transform_1(%arg0: i32, %arg1: i32, %arg2: i32) -> (i32, i32) {
    %c0_i32 = arith.constant 0 : i32
    return %arg2, %arg1 : i32, i32
  }
  func.func @transform_2(%arg0: i32, %arg1: i32, %arg2: i32) -> (i32, i32) {
    %c0_i32 = arith.constant 0 : i32
    %c0_i32_0 = arith.constant 0 : i32
    return %c0_i32, %arg1 : i32, i32
  }
  func.func @transform_3(%arg0: i32, %arg1: i32, %arg2: i32) -> (i32, i32) {
    %c0_i32 = arith.constant 0 : i32
    return %arg0, %arg1 : i32, i32
  }
}

</mosaic_0001>

<llo_original>
// kernel: tpu_custom_call.1
$region0: #{tpu_custom_call.1}
  #allocation0 [shape = 'u32[]', space=smem, size = 0x4, offset = 0x4, fixed_abs, tag = 'smem constant byte address 0x4 - core index']
  #allocation1 [shape = 'u32[144,128]{1,0:T(1,128)}', space=vmem, size = 0x12000, scoped, tag = 'internal scratch']
  #allocation2 [shape = 'f32[16,32]{1,0:T(8,128)}', space=vmem, size = 0x2000, scoped, tag = 'scratch operand']
  %s0 = inlined_call_operand.hbm [shape: f32[16,32], index: 0, kind: input, shape index: {}]
  %s1 = inlined_call_operand.hbm [shape: f32[32,32], index: 1, kind: input, shape index: {}]
  %s2 = inlined_call_operand.vmem [shape: f32[1,32], index: 2, kind: input, shape index: {}]
  %s3 = inlined_call_operand.hbm [shape: f32[16,32], index: 3, kind: output, shape index: {}]
  %s4 = sld [smem:[#allocation0]]
  $region38: #{tpu_custom_call.1} parent=0
    _
  %s6 = ssub.s32 1, %s4
  %s7 = scalar_select 0, %s6, %s4
  $region1: #{tpu_custom_call.1} parent=0
    #allocation3 [shape = 'u8[8192]{0}', space=vmem, size = 0x2000, scoped, tag = 'input window, operand 0, single buffered']
    #allocation4 [shape = 's32[1]{0}', space=sflag, size = 0x4, scoped, tag = 'scoped memory for tpu_custom_call.1']
    #allocation5 [shape = 's32[1]{0}', space=sflag, size = 0x4, scoped, tag = 'scoped memory for tpu_custom_call.1']
    #allocation6 [shape = 'u8[16384]{0}', space=vmem, size = 0x4000, scoped, tag = 'input window, operand 1, single buffered']
    #allocation7 [shape = 's32[1]{0}', space=sflag, size = 0x4, scoped, tag = 'scoped memory for tpu_custom_call.1']
    #allocation8 [shape = 'u8[8192]{0}', space=vmem, size = 0x2000, scoped, tag = 'output window, operand 0, single buffered']
    %8 = vsyncpa [#allocation4], 0
    %9 = vsyncpa [#allocation7], 0
    %10 = vsyncpa [#allocation5], 0
    // Predicated region
    $region2: #{tpu_custom_call.1} parent=1 // pred_check
      _
    $region3: #{tpu_custom_call.1} parent=1 // pred_check_branch
      %12 = sbr.rel (0) target = $region5
    $region4: #{tpu_custom_call.1} parent=1 // pred_region
      %s14 = ssub.s32 256, 256
      %15 = vsyncadd [#allocation4], %s14
      %s16 = sshll.u32 [#allocation3], 4
      %s17 = int_to_ptr.vmem [resolvable:$true] %s16
      %22 = dma.hbm_to_vmem [thread:$0]  %s0, 256, %s17, [#allocation4], 128, 128, 8
    $region5: #{tpu_custom_call.1} parent=1 // pred_fallthru
      _
    // Predicated region
    $region6: #{tpu_custom_call.1} parent=1 // pred_check
      _
    $region7: #{tpu_custom_call.1} parent=1 // pred_check_branch
      %24 = sbr.rel (0) target = $region9
    $region8: #{tpu_custom_call.1} parent=1 // pred_region
      %s26 = ssub.s32 512, 512
      %27 = vsyncadd [#allocation7], %s26
      %s28 = sshll.u32 [#allocation6], 4
      %s29 = int_to_ptr.vmem [resolvable:$true] %s28
      %34 = dma.hbm_to_vmem [thread:$0]  %s1, 512, %s29, [#allocation7], 128, 128, 8
    $region9: #{tpu_custom_call.1} parent=1 // pred_fallthru
      _
    // Predicated region
    $region10: #{tpu_custom_call.1} parent=1 // pred_check
      _
    $region11: #{tpu_custom_call.1} parent=1 // pred_check_branch
      %36 = sbr.rel (0) target = $region13
    $region12: #{tpu_custom_call.1} parent=1 // pred_region
      _
    $region13: #{tpu_custom_call.1} parent=1 // pred_fallthru
      _
    // Predicated region
    $region14: #{tpu_custom_call.1} parent=1 // pred_check
      _
    $region15: #{tpu_custom_call.1} parent=1 // pred_check_branch
      %38 = sbr.rel (0) target = $region17
    $region16: #{tpu_custom_call.1} parent=1 // pred_region
      %39 = dma.done [#allocation4], 256
    $region17: #{tpu_custom_call.1} parent=1 // pred_fallthru
      _
    // Predicated region
    $region18: #{tpu_custom_call.1} parent=1 // pred_check
      _
    $region19: #{tpu_custom_call.1} parent=1 // pred_check_branch
      %41 = sbr.rel (0) target = $region21
    $region20: #{tpu_custom_call.1} parent=1 // pred_region
      %42 = dma.done [#allocation7], 512
    $region21: #{tpu_custom_call.1} parent=1 // pred_fallthru
      _
    %p43 = scmp.eq.s32.totalorder 0, 0
    // Predicated region
    $region22: #{tpu_custom_call.1} parent=1 // pred_check
      %p44 = pneg %p43
    $region23: #{tpu_custom_call.1} parent=1 // pred_check_branch
      %46 = sbr.rel (%p44) target = $region25
    $region24: #{tpu_custom_call.1} parent=1 // pred_region
      %vm47 = vcmask 261120
      %48 = vst.msk [vmem:[#allocation2] sm:$0xff] %vm47, 0.0
      %49 = vst.msk [vmem:[#allocation2 + $0x8] sm:$0xff] %vm47, 0.0
    $region25: #{tpu_custom_call.1} parent=1 // pred_fallthru
      _
    %v50 = vld [vmem:[#allocation2] sm:$0xff]
    %v51 = vld [vmem:[#allocation2 + $0x8] sm:$0xff]
    %v52 = vld [vmem:[#allocation3] sm:$0xff]
    %v53 = vld [vmem:[#allocation3 + $0x8] sm:$0xff]
    %v54 = vld [vmem:[#allocation6] sm:$0xff]
    %v55 = vld [vmem:[#allocation6 + $0x8] sm:$0xff]
    %v56 = vld [vmem:[#allocation6 + $0x10] sm:$0xff]
    %v57 = vld [vmem:[#allocation6 + $0x18] sm:$0xff]
    %vm58 = vcmask 261120
    %v60 = vsel %vm58, %v52, 0
    %v63 = vsel %vm58, %v53, 0
    %65 = vmatprep.subr.mxu0 0.0
    %66 = vmatpush1.msra.mxu0 %v54
    %67 = vmatprep.subr.mxu0 0.0
    %68 = vmatpush1.msra.mxu0 %v55
    %69 = vmatprep.subr.mxu0 0.0
    %70 = vmatpush1.msra.mxu0 %v56
    %71 = vmatprep.subr.mxu0 0.0
    %72 = vmatpush1.msra.mxu0 %v57
    %73 = vmatprep.subr.mxu0 0.0
    %74 = vmatpush1.msra.mxu0 0.0
    %75 = vmatprep.subr.mxu0 0.0
    %76 = vmatpush1.msra.mxu0 0.0
    %77 = vmatprep.subr.mxu0 0.0
    %78 = vmatpush1.msra.mxu0 0.0
    %79 = vmatprep.subr.mxu0 0.0
    %80 = vmatpush1.msra.mxu0 0.0
    %81 = vmatprep.subr.mxu0 0.0
    %82 = vmatpush1.msra.mxu0 0.0
    %83 = vmatprep.subr.mxu0 0.0
    %84 = vmatpush1.msra.mxu0 0.0
    %85 = vmatprep.subr.mxu0 0.0
    %86 = vmatpush1.msra.mxu0 0.0
    %87 = vmatprep.subr.mxu0 0.0
    %88 = vmatpush1.msra.mxu0 0.0
    %89 = vmatprep.subr.mxu0 0.0
    %90 = vmatpush1.msra.mxu0 0.0
    %91 = vmatprep.subr.mxu0 0.0
    %92 = vmatpush1.msra.mxu0 0.0
    %93 = vmatprep.subr.mxu0 0.0
    %94 = vmatpush1.msra.mxu0 0.0
    %95 = vmatprep.subr.mxu0 0.0
    %96 = vmatpush1.msra.mxu0 0.0
    %97 = vmatprep.subr.mxu0 0.0
    %98 = vmatpush1.msra.mxu0 0.0
    %99 = vmatprep.subr.mxu0 0.0
    %100 = vmatpush1.msra.mxu0 0.0
    %101 = vmatprep.subr.mxu0 0.0
    %102 = vmatpush1.msra.mxu0 0.0
    %103 = vmatprep.subr.mxu0 0.0
    %104 = vmatpush1.msra.mxu0 0.0
    %105 = vmatprep.subr.mxu0 0.0
    %106 = vmatpush1.msra.mxu0 0.0
    %107 = vmatprep.subr.mxu0 0.0
    %108 = vmatpush1.msra.mxu0 0.0
    %109 = vmatprep.subr.mxu0 0.0
    %110 = vmatpush1.msra.mxu0 0.0
    %111 = vmatprep.subr.mxu0 0.0
    %112 = vmatpush1.msra.mxu0 0.0
    %113 = vmatprep.subr.mxu0 0.0
    %114 = vmatpush1.msra.mxu0 0.0
    %115 = vmatprep.subr.mxu0 0.0
    %116 = vmatpush1.msra.mxu0 0.0
    %117 = vmatprep.subr.mxu0 0.0
    %118 = vmatpush1.msra.mxu0 0.0
    %119 = vmatprep.subr.mxu0 0.0
    %120 = vmatpush1.msra.mxu0 0.0
    %121 = vmatprep.subr.mxu0 0.0
    %122 = vmatpush1.msra.mxu0 0.0
    %123 = vmatprep.subr.mxu0 0.0
    %124 = vmatpush1.msra.mxu0 0.0
    %125 = vmatprep.subr.mxu0 0.0
    %126 = vmatpush1.msra.mxu0 0.0
    %127 = vmatprep.subr.mxu0 0.0
    %128 = vmatpush1.msra.mxu0 0.0
    %129 = vmatprep.mubr.f32.mxu0 0.0
    %130 = vmatmul.mubr.f32.gmra.mrb[0].mxu0 %v60
    %v131 = vpop.f32.mrb[0].mxu0
    %v132 = vadd.f32 0.0, %v131
    %v133 = vpop.f32.mrb[0].mxu0
    %134 = vmatprep.mubr.f32.mxu0 0.0
    %135 = vmatmul.mubr.f32.gmra.mrb[0].mxu0 %v63
    %v136 = vpop.f32.mrb[0].mxu0
    %v137 = vadd.f32 0.0, %v136
    %v138 = vpop.f32.mrb[0].mxu0
    %139 = vdwg.mxu0
    %v140 = vadd.f32 %v50, %v132
    %v141 = vadd.f32 %v51, %v137
    %142 = vst.msk [vmem:[#allocation2] sm:$0xff] %vm58, %v140
    %143 = vst.msk [vmem:[#allocation2 + $0x8] sm:$0xff] %vm58, %v141
    // Predicated region
    $region26: #{tpu_custom_call.1} parent=1 // pred_check
      %p144 = pneg %p43
    $region27: #{tpu_custom_call.1} parent=1 // pred_check_branch
      %146 = sbr.rel (%p144) target = $region29
    $region28: #{tpu_custom_call.1} parent=1 // pred_region
      %v147 = vld [vmem:[#allocation2] sm:$0xff]
      %v148 = vld [vmem:[#allocation2 + $0x8] sm:$0xff]
      %v149 = vld [vmem:[%s2] sm:$0x1]
      %v151 = vlaneseq
      %v152 = vshrl.u32 %v151, 7
      %v153 = vsub.s32 0, %v152
      %v154 = vrot.slane %v149, %v153
      %v156 = vadd.f32 %v147, %v154
      %v157 = vadd.f32 %v148, %v154
      %158 = vst.msk [vmem:[#allocation8] sm:$0xff] %vm58, %v156
      %159 = vst.msk [vmem:[#allocation8 + $0x8] sm:$0xff] %vm58, %v157
    $region29: #{tpu_custom_call.1} parent=1 // pred_fallthru
      _
    // Predicated region
    $region30: #{tpu_custom_call.1} parent=1 // pred_check
      _
    $region31: #{tpu_custom_call.1} parent=1 // pred_check_branch
      %161 = sbr.rel (0) target = $region33
    $region32: #{tpu_custom_call.1} parent=1 // pred_region
      %s163 = ssub.s32 256, 256
      %164 = vsyncadd [#allocation5], %s163
      %s165 = sshll.u32 [#allocation8], 4
      %s166 = int_to_ptr.vmem [resolvable:$true] %s165
      %171 = dma.vmem_to_hbm [thread:$0]  %s166, 256, %s3, [#allocation5], 128, 128, 8
    $region33: #{tpu_custom_call.1} parent=1 // pred_fallthru
      _
    // Predicated region
    $region34: #{tpu_custom_call.1} parent=1 // pred_check
      _
    $region35: #{tpu_custom_call.1} parent=1 // pred_check_branch
      %173 = sbr.rel (0) target = $region37
    $region36: #{tpu_custom_call.1} parent=1 // pred_region
      %174 = dma.done [#allocation5], 256
    $region37: #{tpu_custom_call.1} parent=1 // pred_fallthru
      _
    %175 = vsyncpa [#allocation4], 1
    %176 = vsyncpa [#allocation7], 1
    %177 = vsyncpa [#allocation5], 1

</llo_original>
